<compile_context>
chip_gen: v7x
topology: tpu7x:2x2x1
jax: 0.10.0
libtpu: 0.0.40
codegen_flags: <defaults>
</compile_context>

<pallas_src>
import jax
import jax.numpy as jnp
from jax.experimental import pallas as pl
from jax.experimental.pallas import tpu as pltpu

LANE = 128            # lane width of a vreg
SUBLANE_BF16 = 16     # bf16 sublane packing (one bf16 vreg = [16, 128])


def _round_up(x, m):
    return (x + m - 1) // m * m


# ----------------------------------------------------------------------------
# Kernel
# ----------------------------------------------------------------------------
def _make_actor_kernel(cfg):
    ni, h, kp, ap = cfg["ni"], cfg["h"], cfg["kp"], cfg["ap"]
    o1, o2, o3 = cfg["w1_off"], cfg["w2_off"], cfg["w3_off"]

    def kernel(x_ref, w_ref, b_ref, o_ref):
        # Static, tile-aligned slices of the packed (VMEM-resident) parameters.
        w1 = w_ref[o1:o1 + ni, 0:h]          # bf16 (I, H)
        w2 = w_ref[o2:o2 + h, 0:kp]          # bf16 (H, 384)
        w3 = w_ref[o3:o3 + kp, 0:ap]         # bf16 (384, 128)
        b1 = b_ref[0:1, 0:h]                 # f32  (1, H)
        b2 = b_ref[1:2, 0:kp]                # f32  (1, 384)
        b3 = b_ref[2:3, 0:ap]                # f32  (1, 128)

        # Layer 1: Linear(I -> H) + ReLU   (bf16 MXU, f32 accumulate/elementwise)
        x = x_ref[...].astype(jnp.bfloat16)
        h1 = jnp.dot(x, w1, preferred_element_type=jnp.float32) + b1
        h1 = jnp.maximum(h1, 0.0)

        # Layer 2: Linear(H -> 300 [padded 384]) + ReLU
        h2 = jnp.dot(h1.astype(jnp.bfloat16), w2,
                     preferred_element_type=jnp.float32) + b2
        h2 = jnp.maximum(h2, 0.0)

        # Layer 3: Linear(300 -> A [padded 128]) + Tanh, scaled by 2
        h3 = jnp.dot(h2.astype(jnp.bfloat16), w3,
                     preferred_element_type=jnp.float32) + b3
        o_ref[...] = 2.0 * jnp.tanh(h3)      # lane-dense (TILE_B, 128) store

    return kernel


# ----------------------------------------------------------------------------
# Parameter packing (done once, outside the hot path)
# ----------------------------------------------------------------------------
def pack_actor_params(params, num_inputs, hidden_size, num_outputs):
    ni, h, k, a = num_inputs, hidden_size, 300, num_outputs
    kp = _round_up(k, LANE)                      # 300 -> 384 (3 x 128)
    ap = _round_up(max(a, 1), LANE)              # 4   -> 128 (lane-dense output)

    # bf16-tile-aligned row offsets inside the single weight buffer.
    w1_off = 0
    w2_off = _round_up(w1_off + ni, SUBLANE_BF16)
    w3_off = _round_up(w2_off + h, SUBLANE_BF16)
    w_rows = _round_up(w3_off + kp, SUBLANE_BF16)
    lane_w = max(h, kp, ap)

    wpack = jnp.zeros((w_rows, lane_w), jnp.bfloat16)
    wpack = wpack.at[w1_off:w1_off + ni, 0:h].set(params["w1"].astype(jnp.bfloat16))
    wpack = wpack.at[w2_off:w2_off + h, 0:k].set(params["w2"].astype(jnp.bfloat16))
    wpack = wpack.at[w3_off:w3_off + k, 0:a].set(params["w3"].astype(jnp.bfloat16))

    # Biases kept in f32 (elementwise math stays f32); padded lanes are exactly 0
    # so ReLU(0)=0 and padded output lanes are tanh(0)=0.
    bpack = jnp.zeros((8, lane_w), jnp.float32)
    bpack = bpack.at[0, 0:h].set(params["b1"].reshape(-1))
    bpack = bpack.at[1, 0:k].set(params["b2"].reshape(-1))
    bpack = bpack.at[2, 0:a].set(params["b3"].reshape(-1))

    cfg = dict(ni=ni, h=h, kp=kp, ap=ap, a=a,
               w1_off=w1_off, w2_off=w2_off, w3_off=w3_off,
               w_rows=w_rows, lane_w=lane_w)
    return wpack, bpack, cfg


# ----------------------------------------------------------------------------
# Wrapper
# ----------------------------------------------------------------------------
def actor_forward(x, wpack, bpack, cfg, *, tile_b=None):
    """x: (B, num_inputs) f32. Returns (B, num_outputs) f32."""
    b = x.shape[0]
    ni, ap, a = cfg["ni"], cfg["ap"], cfg["a"]

    # Batch tile: fill the MXU height once batched (>=256 on v6e/v7x), while
    # still handling tiny batches by padding up to one 8-row sublane tile.
    if tile_b is None:
        tile_b = 256 if b >= 256 else _round_up(max(b, 8), 8)
    b_pad = _round_up(b, tile_b)
    if b_pad != b:
        x = jnp.pad(x, ((0, b_pad - b), (0, 0)))

    grid = (b_pad // tile_b,)
    kernel = _make_actor_kernel(cfg)

    out = pl.pallas_call(
        kernel,
        out_shape=jax.ShapeDtypeStruct((b_pad, ap), jnp.float32),
        grid_spec=pltpu.PrefetchScalarGridSpec(
            num_scalar_prefetch=0,
            grid=grid,
            in_specs=[
                # activations: tiled on batch, pipelined against compute
                pl.BlockSpec((tile_b, ni), lambda i: (i, 0)),
                # packed weights / biases: constant block -> DMA once, VMEM-resident
                pl.BlockSpec((cfg["w_rows"], cfg["lane_w"]), lambda i: (0, 0)),
                pl.BlockSpec((8, cfg["lane_w"]), lambda i: (0, 0)),
            ],
            out_specs=pl.BlockSpec((tile_b, ap), lambda i: (i, 0)),
        ),
        compiler_params=pltpu.CompilerParams(
            dimension_semantics=("parallel",)),
    )(x, wpack, bpack)

    return out[:b, :a]


# ----------------------------------------------------------------------------
# Init + pure-JAX reference
# ----------------------------------------------------------------------------
def init_params(key, num_inputs, hidden_size, num_outputs):
    """Deterministic synthetic parameters (PyTorch-like uniform fan-in init)."""
    ks = jax.random.split(key, 6)

    def lin(kw, kb, fan_in, fan_out):
        bound = 1.0 / jnp.sqrt(fan_in)
        w = jax.random.uniform(kw, (fan_in, fan_out), jnp.float32, -bound, bound)
        b = jax.random.uniform(kb, (1, fan_out), jnp.float32, -bound, bound)
        return w, b

    w1, b1 = lin(ks[0], ks[1], num_inputs, hidden_size)
    w2, b2 = lin(ks[2], ks[3], hidden_size, 300)
    w3, b3 = lin(ks[4], ks[5], 300, num_outputs)
    return {"w1": w1, "b1": b1, "w2": w2, "b2": b2, "w3": w3, "b3": b3}


def actor_ref(x, p):
    """Pure-JAX reference mirroring the kernel math (bf16 dot inputs, f32 acc)."""
    def mm(a, w):
        a16 = a.astype(jnp.bfloat16).astype(jnp.float32)
        w16 = w.astype(jnp.bfloat16).astype(jnp.float32)
        return jnp.dot(a16, w16)

    h = jnp.maximum(mm(x, p["w1"]) + p["b1"], 0.0)
    h = jnp.maximum(mm(h, p["w2"]) + p["b2"], 0.0)
    return 2.0 * jnp.tanh(mm(h, p["w3"]) + p["b3"])


# ----------------------------------------------------------------------------
if __name__ == "__main__":
    batch = 2
    num_inputs = 16   # observation dim
    hidden_size = 32
    num_outputs = 4   # action_space.shape[0]

    key = jax.random.PRNGKey(0)
    k_x, k_p, k_xb = jax.random.split(key, 3)
    x = jax.random.normal(k_x, (batch, num_inputs), jnp.float32)
    params = init_params(k_p, num_inputs, hidden_size, num_outputs)
    wpack, bpack, cfg = pack_actor_params(params, num_inputs, hidden_size, num_outputs)

    # Small-batch path (original module shapes).
    out = jax.block_until_ready(actor_forward(x, wpack, bpack, cfg))
    ref = actor_ref(x, params)
    assert out.shape == (batch, num_outputs)
    assert jnp.allclose(out, ref, atol=1e-4, rtol=1e-4), "mismatch vs JAX reference (small batch)"

    # Batched path: multi-step grid, weights stay VMEM-resident, 256-row MXU tiles.
    big_batch = 512
    xb = jax.random.normal(k_xb, (big_batch, num_inputs), jnp.float32)
    outb = jax.block_until_ready(actor_forward(xb, wpack, bpack, cfg, tile_b=256))
    refb = actor_ref(xb, params)
    assert outb.shape == (big_batch, num_outputs)
    assert jnp.allclose(outb, refb, atol=1e-4, rtol=1e-4), "mismatch vs JAX reference (batched)"

    print("KERNEL_OK")
</pallas_src>

<mosaic_0001>
module attributes {stable_mosaic.version = 11 : i64} {
  func.func @kernel(%arg0: i32, %arg1: memref<8x16xf32, #tpu.memory_space<vmem>>, %arg2: memref<432x384xbf16, #tpu.memory_space<vmem>>, %arg3: memref<8x384xf32, #tpu.memory_space<vmem>>, %arg4: memref<8x128xf32, #tpu.memory_space<vmem>>) attributes {dimension_semantics = [#tpu.dimension_semantics<parallel>], iteration_bounds = array<i64: 1>, scalar_prefetch = 0 : i64, scratch_operands = 0 : i64, tpu.core_type = #tpu.core_type<tc>, window_params = [{transform_indices = @transform_0, window_bounds = array<i64: 8, 16>}, {pipeline_mode = #tpu.pipeline_mode<synchronous>, transform_indices = @transform_1, window_bounds = array<i64: 432, 384>}, {pipeline_mode = #tpu.pipeline_mode<synchronous>, transform_indices = @transform_2, window_bounds = array<i64: 8, 384>}, {transform_indices = @transform_3, window_bounds = array<i64: 8, 128>}]} {
    %c0 = arith.constant 0 : index
    %c0_0 = arith.constant 0 : index
    %0 = vector.load %arg2[%c0, %c0_0] : memref<432x384xbf16, #tpu.memory_space<vmem>>, vector<16x32xbf16>
    %c16 = arith.constant 16 : index
    %c0_1 = arith.constant 0 : index
    %1 = vector.load %arg2[%c16, %c0_1] : memref<432x384xbf16, #tpu.memory_space<vmem>>, vector<32x384xbf16>
    %c48 = arith.constant 48 : index
    %c0_2 = arith.constant 0 : index
    %2 = vector.load %arg2[%c48, %c0_2] : memref<432x384xbf16, #tpu.memory_space<vmem>>, vector<384x128xbf16>
    %c0_3 = arith.constant 0 : index
    %c0_4 = arith.constant 0 : index
    %3 = vector.load %arg3[%c0_3, %c0_4] : memref<8x384xf32, #tpu.memory_space<vmem>>, vector<1x32xf32>
    %c1 = arith.constant 1 : index
    %c0_5 = arith.constant 0 : index
    %4 = vector.load %arg3[%c1, %c0_5] : memref<8x384xf32, #tpu.memory_space<vmem>>, vector<1x384xf32>
    %c2 = arith.constant 2 : index
    %c0_6 = arith.constant 0 : index
    %5 = vector.load %arg3[%c2, %c0_6] : memref<8x384xf32, #tpu.memory_space<vmem>>, vector<1x128xf32>
    %c0_7 = arith.constant 0 : index
    %c0_8 = arith.constant 0 : index
    %6 = vector.load %arg1[%c0_7, %c0_8] : memref<8x16xf32, #tpu.memory_space<vmem>>, vector<8x16xf32>
    %7 = arith.truncf %6 : vector<8x16xf32> to vector<8x16xbf16>
    %cst = arith.constant dense<0.000000e+00> : vector<8x32xf32>
    %8 = tpu.matmul %7, %0, %cst {dimension_numbers = #tpu.dot_dimension_numbers<[1], [0], [0], [1], [0, 0, 1, 1], [], []>} : vector<8x16xbf16>, vector<16x32xbf16>, vector<8x32xf32> -> vector<8x32xf32>
    %9 = vector.broadcast %3 : vector<1x32xf32> to vector<8x32xf32>
    %10 = arith.addf %8, %9 : vector<8x32xf32>
    %cst_9 = arith.constant 0.000000e+00 : f32
    %11 = vector.broadcast %cst_9 : f32 to vector<8x32xf32>
    %12 = arith.maximumf %10, %11 : vector<8x32xf32>
    %13 = arith.truncf %12 : vector<8x32xf32> to vector<8x32xbf16>
    %cst_10 = arith.constant dense<0.000000e+00> : vector<8x384xf32>
    %14 = tpu.matmul %13, %1, %cst_10 {dimension_numbers = #tpu.dot_dimension_numbers<[1], [0], [0], [1], [0, 0, 1, 1], [], []>} : vector<8x32xbf16>, vector<32x384xbf16>, vector<8x384xf32> -> vector<8x384xf32>
    %15 = vector.broadcast %4 : vector<1x384xf32> to vector<8x384xf32>
    %16 = arith.addf %14, %15 : vector<8x384xf32>
    %cst_11 = arith.constant 0.000000e+00 : f32
    %17 = vector.broadcast %cst_11 : f32 to vector<8x384xf32>
    %18 = arith.maximumf %16, %17 : vector<8x384xf32>
    %19 = arith.truncf %18 : vector<8x384xf32> to vector<8x384xbf16>
    %cst_12 = arith.constant dense<0.000000e+00> : vector<8x128xf32>
    %20 = tpu.matmul %19, %2, %cst_12 {dimension_numbers = #tpu.dot_dimension_numbers<[1], [0], [0], [1], [0, 0, 1, 1], [], []>} : vector<8x384xbf16>, vector<384x128xbf16>, vector<8x128xf32> -> vector<8x128xf32>
    %21 = vector.broadcast %5 : vector<1x128xf32> to vector<8x128xf32>
    %22 = arith.addf %20, %21 : vector<8x128xf32>
    %23 = math.tanh %22 : vector<8x128xf32>
    %cst_13 = arith.constant 2.000000e+00 : f32
    %24 = vector.broadcast %cst_13 : f32 to vector<8x128xf32>
    %25 = arith.mulf %24, %23 : vector<8x128xf32>
    %c0_14 = arith.constant 0 : index
    %c0_15 = arith.constant 0 : index
    %26 = vector.load %arg4[%c0_14, %c0_15] : memref<8x128xf32, #tpu.memory_space<vmem>>, vector<8x128xf32>
    tpu.vector_store %arg4[%c0_14, %c0_15], %25 {strides = array<i32>} : memref<8x128xf32, #tpu.memory_space<vmem>>, vector<8x128xf32>,
    return
  }
  func.func @transform_0(%arg0: i32) -> (i32, i32) {
    %c0_i32 = arith.constant 0 : i32
    %c0_i32_0 = arith.constant 0 : i32
    return %arg0, %c0_i32 : i32, i32
  }
  func.func @transform_1(%arg0: i32) -> (i32, i32) {
    %c0_i32 = arith.constant 0 : i32
    %c0_i32_0 = arith.constant 0 : i32
    %c0_i32_1 = arith.constant 0 : i32
    return %c0_i32, %c0_i32_0 : i32, i32
  }
  func.func @transform_2(%arg0: i32) -> (i32, i32) {
    %c0_i32 = arith.constant 0 : i32
    %c0_i32_0 = arith.constant 0 : i32
    %c0_i32_1 = arith.constant 0 : i32
    return %c0_i32, %c0_i32_0 : i32, i32
  }
  func.func @transform_3(%arg0: i32) -> (i32, i32) {
    %c0_i32 = arith.constant 0 : i32
    %c0_i32_0 = arith.constant 0 : i32
    return %arg0, %c0_i32 : i32, i32
  }
}

</mosaic_0001>

<llo_original>
// kernel: tpu_custom_call.1
$region0: #{tpu_custom_call.1}
  #allocation0 [shape = 'u32[]', space=smem, size = 0x4, offset = 0x4, fixed_abs, tag = 'smem constant byte address 0x4 - core index']
  #allocation1 [shape = 'u32[144,128]{1,0:T(1,128)}', space=vmem, size = 0x12000, scoped, tag = 'internal scratch']
  %s0 = inlined_call_operand.hbm [shape: f32[8,16], index: 0, kind: input, shape index: {}]
  %s1 = inlined_call_operand.hbm [shape: bf16[432,384], index: 1, kind: input, shape index: {}]
  %s2 = inlined_call_operand.hbm [shape: f32[8,384], index: 2, kind: input, shape index: {}]
  %s3 = inlined_call_operand.hbm [shape: f32[8,128], index: 3, kind: output, shape index: {}]
  %s4 = sld [smem:[#allocation0]]
  $region34: #{tpu_custom_call.1} parent=0
    _
  %s6 = ssub.s32 1, %s4
  %s7 = scalar_select 0, %s6, %s4
  $region1: #{tpu_custom_call.1} parent=0
    #allocation2 [shape = 'u8[4096]{0}', space=vmem, size = 0x1000, scoped, tag = 'input window, operand 0, single buffered']
    #allocation3 [shape = 's32[1]{0}', space=sflag, size = 0x4, scoped, tag = 'scoped memory for tpu_custom_call.1']
    #allocation4 [shape = 's32[1]{0}', space=sflag, size = 0x4, scoped, tag = 'scoped memory for tpu_custom_call.1']
    #allocation5 [shape = 'u8[331776]{0}', space=vmem, size = 0x51000, scoped, tag = 'input window, operand 1, single buffered']
    #allocation6 [shape = 's32[1]{0}', space=sflag, size = 0x4, scoped, tag = 'scoped memory for tpu_custom_call.1']
    #allocation7 [shape = 'u8[12288]{0}', space=vmem, size = 0x3000, scoped, tag = 'input window, operand 2, single buffered']
    #allocation8 [shape = 'u8[4096]{0}', space=vmem, size = 0x1000, scoped, tag = 'output window, operand 0, single buffered']
    %8 = vsyncpa [#allocation3], 0
    %9 = vsyncpa [#allocation6], 0
    %10 = vsyncpa [#allocation4], 0
    // Predicated region
    $region2: #{tpu_custom_call.1} parent=1 // pred_check
      _
    $region3: #{tpu_custom_call.1} parent=1 // pred_check_branch
      %12 = sbr.rel (0) target = $region5
    $region4: #{tpu_custom_call.1} parent=1 // pred_region
      %s14 = ssub.s32 128, 128
      %15 = vsyncadd [#allocation3], %s14
      %s17 = sshll.u32 [#allocation2], 4
      %s18 = int_to_ptr.vmem [resolvable:$true] %s17
      %20 = dma.hbm_to_vmem [thread:$0]  %s0, 128, %s18, [#allocation3]
    $region5: #{tpu_custom_call.1} parent=1 // pred_fallthru
      _
    // Predicated region
    $region6: #{tpu_custom_call.1} parent=1 // pred_check
      _
    $region7: #{tpu_custom_call.1} parent=1 // pred_check_branch
      %22 = sbr.rel (0) target = $region9
    $region8: #{tpu_custom_call.1} parent=1 // pred_region
      %s24 = ssub.s32 10368, 10368
      %25 = vsyncadd [#allocation6], %s24
      %s26 = sshll.u32 [#allocation5], 4
      %s27 = int_to_ptr.vmem [resolvable:$true] %s26
      %32 = dma.hbm_to_vmem [thread:$0]  %s1, 10368, %s27, [#allocation6], 192, 192, 12
    $region9: #{tpu_custom_call.1} parent=1 // pred_fallthru
      _
    // Predicated region
    $region10: #{tpu_custom_call.1} parent=1 // pred_check
      _
    $region11: #{tpu_custom_call.1} parent=1 // pred_check_branch
      %34 = sbr.rel (0) target = $region13
    $region12: #{tpu_custom_call.1} parent=1 // pred_region
      %s36 = ssub.s32 384, 384
      %37 = vsyncadd [#allocation6], %s36
      %s39 = sshll.u32 [#allocation7], 4
      %s40 = int_to_ptr.vmem [resolvable:$true] %s39
      %42 = dma.hbm_to_vmem [thread:$0]  %s2, 384, %s40, [#allocation6]
    $region13: #{tpu_custom_call.1} parent=1 // pred_fallthru
      _
    // Predicated region
    $region14: #{tpu_custom_call.1} parent=1 // pred_check
      _
    $region15: #{tpu_custom_call.1} parent=1 // pred_check_branch
      %44 = sbr.rel (0) target = $region17
    $region16: #{tpu_custom_call.1} parent=1 // pred_region
      %45 = dma.done [#allocation3], 128
    $region17: #{tpu_custom_call.1} parent=1 // pred_fallthru
      _
    // Predicated region
    $region18: #{tpu_custom_call.1} parent=1 // pred_check
      _
    $region19: #{tpu_custom_call.1} parent=1 // pred_check_branch
      %47 = sbr.rel (0) target = $region21
    $region20: #{tpu_custom_call.1} parent=1 // pred_region
      %48 = dma.done [#allocation6], 10368
    $region21: #{tpu_custom_call.1} parent=1 // pred_fallthru
      _
    // Predicated region
    $region22: #{tpu_custom_call.1} parent=1 // pred_check
      _
    $region23: #{tpu_custom_call.1} parent=1 // pred_check_branch
      %50 = sbr.rel (0) target = $region25
    $region24: #{tpu_custom_call.1} parent=1 // pred_region
      %51 = dma.done [#allocation6], 384
    $region25: #{tpu_custom_call.1} parent=1 // pred_fallthru
      _
    %v53 = vld [vmem:[#allocation5] sm:$0xf]
    %v54 = vld [vmem:[#allocation5 + $0xc] sm:$0xf]
    %v55 = vld [vmem:[#allocation5 + $0x18] sm:$0xff]
    %v56 = vld [vmem:[#allocation5 + $0x20] sm:$0xf]
    %v57 = vld [vmem:[#allocation5 + $0x24] sm:$0xff]
    %v58 = vld [vmem:[#allocation5 + $0x2c] sm:$0xf]
    %v59 = vld [vmem:[#allocation5 + $0x30] sm:$0xff]
    %v60 = vld [vmem:[#allocation5 + $0x38] sm:$0xf]
    %v61 = vld [vmem:[#allocation5 + $0x3c] sm:$0xff]
    %v62 = vld [vmem:[#allocation5 + $0x44] sm:$0xf]
    %v63 = vld [vmem:[#allocation5 + $0x48] sm:$0xf]
    %v64 = vld [vmem:[#allocation5 + $0x54] sm:$0xf]
    %v65 = vld [vmem:[#allocation5 + $0x60] sm:$0xf]
    %v66 = vld [vmem:[#allocation5 + $0x6c] sm:$0xf]
    %v67 = vld [vmem:[#allocation5 + $0x78] sm:$0xf]
    %v68 = vld [vmem:[#allocation5 + $0x84] sm:$0xf]
    %v69 = vld [vmem:[#allocation5 + $0x90] sm:$0xf]
    %v70 = vld [vmem:[#allocation5 + $0x9c] sm:$0xf]
    %v71 = vld [vmem:[#allocation5 + $0xa8] sm:$0xf]
    %v72 = vld [vmem:[#allocation5 + $0xb4] sm:$0xf]
    %v73 = vld [vmem:[#allocation5 + $0xc0] sm:$0xf]
    %v74 = vld [vmem:[#allocation5 + $0xcc] sm:$0xf]
    %v75 = vld [vmem:[#allocation5 + $0xd8] sm:$0xf]
    %v76 = vld [vmem:[#allocation5 + $0xe4] sm:$0xf]
    %v77 = vld [vmem:[#allocation5 + $0xf0] sm:$0xf]
    %v78 = vld [vmem:[#allocation5 + $0xfc] sm:$0xf]
    %v79 = vld [vmem:[#allocation5 + $0x108] sm:$0xf]
    %v80 = vld [vmem:[#allocation5 + $0x114] sm:$0xf]
    %v81 = vld [vmem:[#allocation5 + $0x120] sm:$0xf]
    %v82 = vld [vmem:[#allocation5 + $0x12c] sm:$0xf]
    %v83 = vld [vmem:[#allocation5 + $0x138] sm:$0xf]
    %v84 = vld [vmem:[#allocation5 + $0x144] sm:$0xf]
    %v85 = vld [vmem:[#allocation5 + $0x150] sm:$0xf]
    %v86 = vld [vmem:[#allocation5 + $0x15c] sm:$0xf]
    %v87 = vld [vmem:[#allocation5 + $0x168] sm:$0xf]
    %v88 = vld [vmem:[#allocation5 + $0x174] sm:$0xf]
    %v89 = vld [vmem:[#allocation5 + $0x180] sm:$0xf]
    %v90 = vld [vmem:[#allocation5 + $0x18c] sm:$0xf]
    %v91 = vld [vmem:[#allocation5 + $0x198] sm:$0xf]
    %v92 = vld [vmem:[#allocation5 + $0x1a4] sm:$0xf]
    %v93 = vld [vmem:[#allocation5 + $0x1b0] sm:$0xf]
    %v94 = vld [vmem:[#allocation5 + $0x1bc] sm:$0xf]
    %v95 = vld [vmem:[#allocation5 + $0x1c8] sm:$0xf]
    %v96 = vld [vmem:[#allocation5 + $0x1d4] sm:$0xf]
    %v97 = vld [vmem:[#allocation5 + $0x1e0] sm:$0xf]
    %v98 = vld [vmem:[#allocation5 + $0x1ec] sm:$0xf]
    %v99 = vld [vmem:[#allocation5 + $0x1f8] sm:$0xf]
    %v100 = vld [vmem:[#allocation5 + $0x204] sm:$0xf]
    %v101 = vld [vmem:[#allocation5 + $0x210] sm:$0xf]
    %v102 = vld [vmem:[#allocation5 + $0x21c] sm:$0xf]
    %v103 = vld [vmem:[#allocation5 + $0x228] sm:$0xf]
    %v104 = vld [vmem:[#allocation5 + $0x234] sm:$0xf]
    %v105 = vld [vmem:[#allocation5 + $0x240] sm:$0xf]
    %v106 = vld [vmem:[#allocation5 + $0x24c] sm:$0xf]
    %v107 = vld [vmem:[#allocation5 + $0x258] sm:$0xf]
    %v108 = vld [vmem:[#allocation5 + $0x264] sm:$0xf]
    %v109 = vld [vmem:[#allocation5 + $0x270] sm:$0xf]
    %v110 = vld [vmem:[#allocation5 + $0x27c] sm:$0xf]
    %v111 = vld [vmem:[#allocation7] ss:$0 sm:$0xff]
    %s112 = scalar_lea.vmem [#allocation7], 1
    %v113 = vld [vmem:[%s112] ss:$8 sm:$0x7]
    %v114 = vld [vmem:[#allocation7 + $0x2] ss:$0 sm:$0xff]
    %v115 = vld [vmem:[#allocation2] sm:$0xff]
    %v116 = vpack.c.bf16 %v115, %v115
    %v119 = vunpack.c.l.b16 %v53
    %v120 = vunpack.c.l.b16 %v54
    %v121 = vpack.c.b16 %v120, %v119
    %vm123 = vcmask 130048
    %v125 = vsel %vm123, %v116, 0
    %127 = vmatprep.subr.bf16.mxu0 0
    %128 = vmatpush1.bf16.msra.mxu0 %v121
    %129 = vmatprep.subr.bf16.mxu0 0
    %130 = vmatpush1.bf16.msra.mxu0 0
    %131 = vmatprep.subr.bf16.mxu0 0
    %132 = vmatpush1.bf16.msra.mxu0 0
    %133 = vmatprep.subr.bf16.mxu0 0
    %134 = vmatpush1.bf16.msra.mxu0 0
    %135 = vmatprep.subr.bf16.mxu0 0
    %136 = vmatpush1.bf16.msra.mxu0 0
    %137 = vmatprep.subr.bf16.mxu0 0
    %138 = vmatpush1.bf16.msra.mxu0 0
    %139 = vmatprep.subr.bf16.mxu0 0
    %140 = vmatpush1.bf16.msra.mxu0 0
    %141 = vmatprep.subr.bf16.mxu0 0
    %142 = vmatpush1.bf16.msra.mxu0 0
    %143 = vmatprep.subr.bf16.mxu0 0
    %144 = vmatpush1.bf16.msra.mxu0 0
    %145 = vmatprep.subr.bf16.mxu0 0
    %146 = vmatpush1.bf16.msra.mxu0 0
    %147 = vmatprep.subr.bf16.mxu0 0
    %148 = vmatpush1.bf16.msra.mxu0 0
    %149 = vmatprep.subr.bf16.mxu0 0
    %150 = vmatpush1.bf16.msra.mxu0 0
    %151 = vmatprep.subr.bf16.mxu0 0
    %152 = vmatpush1.bf16.msra.mxu0 0
    %153 = vmatprep.subr.bf16.mxu0 0
    %154 = vmatpush1.bf16.msra.mxu0 0
    %155 = vmatprep.subr.bf16.mxu0 0
    %156 = vmatpush1.bf16.msra.mxu0 0
    %157 = vmatprep.subr.bf16.mxu0 0
    %158 = vmatpush1.bf16.msra.mxu0 0
    %159 = vmatprep.mubr.bf16.mxu0 0
    %160 = vmatmul.mubr.bf16.gmra.mrb[0].mxu0 %v125
    %v161 = vpop.f32.mrb[0].mxu0
    %v162 = vadd.f32 %v111, %v161
    %v163 = vpop.f32.mrb[0].mxu0
    %v164 = vpop.f32.mrb[0].mxu0
    %v165 = vpop.f32.mrb[0].mxu0
    %166 = vdwg.mxu0
    %v167 = vmax.f32 %v162, 0.0
    %v168 = vpack.c.bf16 %v167, %v167
    %v170 = vlaneseq
    %v171 = vshrl.u32 %v170, 7
    %v172 = vsub.s32 0, %v171
    %v173 = vrot.slane %v113, %v172
    %v174 = vlaneseq
    %v175 = vshrl.u32 %v174, 7
    %v176 = vsub.s32 1, %v175
    %v177 = vrot.slane %v113, %v176
    %v178 = vlaneseq
    %v179 = vshrl.u32 %v178, 7
    %v180 = vsub.s32 2, %v179
    %v181 = vrot.slane %v113, %v180
    %v193 = vunpack.c.l.b16 %v55
    %v194 = vunpack.c.h.b16 %v55
    %v195 = vunpack.c.l.b16 %v56
    %v196 = vunpack.c.l.b16 %v57
    %v197 = vunpack.c.h.b16 %v57
    %v198 = vunpack.c.l.b16 %v58
    %v199 = vunpack.c.l.b16 %v59
    %v200 = vunpack.c.h.b16 %v59
    %v201 = vunpack.c.l.b16 %v60
    %v202 = vunpack.c.l.b16 %v61
    %v203 = vunpack.c.h.b16 %v61
    %v204 = vunpack.c.l.b16 %v62
    %v205 = vpack.c.b16 %v196, %v193
    %v206 = vpack.c.b16 %v197, %v194
    %v207 = vpack.c.b16 %v198, %v195
    %v208 = vpack.c.b16 %v202, %v199
    %v209 = vpack.c.b16 %v203, %v200
    %v210 = vpack.c.b16 %v204, %v201
    %vm217 = vcmask 261120
    %v219 = vsel %vm217, %v168, 0
    %221 = vmatprep.subr.bf16.mxu0 %v206
    %222 = vmatpush1.bf16.msra.mxu0 %v205
    %223 = vmatprep.subr.bf16.mxu0 %v209
    %224 = vmatpush1.bf16.msra.mxu0 %v208
    %225 = vmatprep.subr.bf16.mxu0 0
    %226 = vmatpush1.bf16.msra.mxu0 0
    %227 = vmatprep.subr.bf16.mxu0 0
    %228 = vmatpush1.bf16.msra.mxu0 0
    %229 = vmatprep.subr.bf16.mxu0 0
    %230 = vmatpush1.bf16.msra.mxu0 0
    %231 = vmatprep.subr.bf16.mxu0 0
    %232 = vmatpush1.bf16.msra.mxu0 0
    %233 = vmatprep.subr.bf16.mxu0 0
    %234 = vmatpush1.bf16.msra.mxu0 0
    %235 = vmatprep.subr.bf16.mxu0 0
    %236 = vmatpush1.bf16.msra.mxu0 0
    %237 = vmatprep.subr.bf16.mxu0 0
    %238 = vmatpush1.bf16.msra.mxu0 0
    %239 = vmatprep.subr.bf16.mxu0 0
    %240 = vmatpush1.bf16.msra.mxu0 0
    %241 = vmatprep.subr.bf16.mxu0 0
    %242 = vmatpush1.bf16.msra.mxu0 0
    %243 = vmatprep.subr.bf16.mxu0 0
    %244 = vmatpush1.bf16.msra.mxu0 0
    %245 = vmatprep.subr.bf16.mxu0 0
    %246 = vmatpush1.bf16.msra.mxu0 0
    %247 = vmatprep.subr.bf16.mxu0 0
    %248 = vmatpush1.bf16.msra.mxu0 0
    %249 = vmatprep.subr.bf16.mxu0 0
    %250 = vmatpush1.bf16.msra.mxu0 0
    %251 = vmatprep.subr.bf16.mxu0 0
    %252 = vmatpush1.bf16.msra.mxu0 0
    %253 = vmatprep.mubr.bf16.mxu0 0
    %254 = vmatmul.mubr.bf16.gmra.mrb[0].mxu0 %v219
    %v255 = vpop.f32.mrb[0].mxu0
    %v256 = vadd.f32 %v173, %v255
    %v257 = vpop.f32.mrb[0].mxu0
    %v258 = vadd.f32 %v177, %v257
    %v259 = vpop.f32.mrb[0].mxu0
    %v260 = vpop.f32.mrb[0].mxu0
    %261 = vdwg.mxu0
    %262 = vmatprep.subr.bf16.mxu0 0
    %263 = vmatpush1.bf16.msra.mxu0 %v207
    %264 = vmatprep.subr.bf16.mxu0 0
    %265 = vmatpush1.bf16.msra.mxu0 %v210
    %266 = vmatprep.subr.bf16.mxu0 0
    %267 = vmatpush1.bf16.msra.mxu0 0
    %268 = vmatprep.subr.bf16.mxu0 0
    %269 = vmatpush1.bf16.msra.mxu0 0
    %270 = vmatprep.subr.bf16.mxu0 0
    %271 = vmatpush1.bf16.msra.mxu0 0
    %272 = vmatprep.subr.bf16.mxu0 0
    %273 = vmatpush1.bf16.msra.mxu0 0
    %274 = vmatprep.subr.bf16.mxu0 0
    %275 = vmatpush1.bf16.msra.mxu0 0
    %276 = vmatprep.subr.bf16.mxu0 0
    %277 = vmatpush1.bf16.msra.mxu0 0
    %278 = vmatprep.subr.bf16.mxu0 0
    %279 = vmatpush1.bf16.msra.mxu0 0
    %280 = vmatprep.subr.bf16.mxu0 0
    %281 = vmatpush1.bf16.msra.mxu0 0
    %282 = vmatprep.subr.bf16.mxu0 0
    %283 = vmatpush1.bf16.msra.mxu0 0
    %284 = vmatprep.subr.bf16.mxu0 0
    %285 = vmatpush1.bf16.msra.mxu0 0
    %286 = vmatprep.subr.bf16.mxu0 0
    %287 = vmatpush1.bf16.msra.mxu0 0
    %288 = vmatprep.subr.bf16.mxu0 0
    %289 = vmatpush1.bf16.msra.mxu0 0
    %290 = vmatprep.subr.bf16.mxu0 0
    %291 = vmatpush1.bf16.msra.mxu0 0
    %292 = vmatprep.subr.bf16.mxu0 0
    %293 = vmatpush1.bf16.msra.mxu0 0
    %294 = vmatprep.mubr.bf16.mxu0 0
    %295 = vmatmul.mubr.bf16.gmra.mrb[0].mxu0 %v219
    %v296 = vpop.f32.mrb[0].mxu0
    %v297 = vadd.f32 %v181, %v296
    %v298 = vpop.f32.mrb[0].mxu0
    %v299 = vpop.f32.mrb[0].mxu0
    %v300 = vpop.f32.mrb[0].mxu0
    %301 = vdwg.mxu0
    %v302 = vmax.f32 %v256, 0.0
    %v303 = vmax.f32 %v258, 0.0
    %v304 = vmax.f32 %v297, 0.0
    %v305 = vpack.c.bf16 %v302, %v302
    %v306 = vpack.c.bf16 %v303, %v303
    %v307 = vpack.c.bf16 %v304, %v304
    %v356 = vunpack.c.l.b16 %v63
    %v357 = vunpack.c.l.b16 %v64
    %v358 = vunpack.c.l.b16 %v65
    %v359 = vunpack.c.l.b16 %v66
    %v360 = vunpack.c.l.b16 %v67
    %v361 = vunpack.c.l.b16 %v68
    %v362 = vunpack.c.l.b16 %v69
    %v363 = vunpack.c.l.b16 %v70
    %v364 = vunpack.c.l.b16 %v71
    %v365 = vunpack.c.l.b16 %v72
    %v366 = vunpack.c.l.b16 %v73
    %v367 = vunpack.c.l.b16 %v74
    %v368 = vunpack.c.l.b16 %v75
    %v369 = vunpack.c.l.b16 %v76
    %v370 = vunpack.c.l.b16 %v77
    %v371 = vunpack.c.l.b16 %v78
    %v372 = vunpack.c.l.b16 %v79
    %v373 = vunpack.c.l.b16 %v80
    %v374 = vunpack.c.l.b16 %v81
    %v375 = vunpack.c.l.b16 %v82
    %v376 = vunpack.c.l.b16 %v83
    %v377 = vunpack.c.l.b16 %v84
    %v378 = vunpack.c.l.b16 %v85
    %v379 = vunpack.c.l.b16 %v86
    %v380 = vunpack.c.l.b16 %v87
    %v381 = vunpack.c.l.b16 %v88
    %v382 = vunpack.c.l.b16 %v89
    %v383 = vunpack.c.l.b16 %v90
    %v384 = vunpack.c.l.b16 %v91
    %v385 = vunpack.c.l.b16 %v92
    %v386 = vunpack.c.l.b16 %v93
    %v387 = vunpack.c.l.b16 %v94
    %v388 = vunpack.c.l.b16 %v95
    %v389 = vunpack.c.l.b16 %v96
    %v390 = vunpack.c.l.b16 %v97
    %v391 = vunpack.c.l.b16 %v98
    %v392 = vunpack.c.l.b16 %v99
    %v393 = vunpack.c.l.b16 %v100
    %v394 = vunpack.c.l.b16 %v101
    %v395 = vunpack.c.l.b16 %v102
    %v396 = vunpack.c.l.b16 %v103
    %v397 = vunpack.c.l.b16 %v104
    %v398 = vunpack.c.l.b16 %v105
    %v399 = vunpack.c.l.b16 %v106
    %v400 = vunpack.c.l.b16 %v107
    %v401 = vunpack.c.l.b16 %v108
    %v402 = vunpack.c.l.b16 %v109
    %v403 = vunpack.c.l.b16 %v110
    %v404 = vpack.c.b16 %v357, %v356
    %v405 = vpack.c.b16 %v359, %v358
    %v406 = vpack.c.b16 %v361, %v360
    %v407 = vpack.c.b16 %v363, %v362
    %v408 = vpack.c.b16 %v365, %v364
    %v409 = vpack.c.b16 %v367, %v366
    %v410 = vpack.c.b16 %v369, %v368
    %v411 = vpack.c.b16 %v371, %v370
    %v412 = vpack.c.b16 %v373, %v372
    %v413 = vpack.c.b16 %v375, %v374
    %v414 = vpack.c.b16 %v377, %v376
    %v415 = vpack.c.b16 %v379, %v378
    %v416 = vpack.c.b16 %v381, %v380
    %v417 = vpack.c.b16 %v383, %v382
    %v418 = vpack.c.b16 %v385, %v384
    %v419 = vpack.c.b16 %v387, %v386
    %v420 = vpack.c.b16 %v389, %v388
    %v421 = vpack.c.b16 %v391, %v390
    %v422 = vpack.c.b16 %v393, %v392
    %v423 = vpack.c.b16 %v395, %v394
    %v424 = vpack.c.b16 %v397, %v396
    %v425 = vpack.c.b16 %v399, %v398
    %v426 = vpack.c.b16 %v401, %v400
    %v427 = vpack.c.b16 %v403, %v402
    %452 = vmatprep.subr.bf16.mxu0 0
    %453 = vmatpush1.bf16.msra.mxu0 %v404
    %454 = vmatprep.subr.bf16.mxu0 0
    %455 = vmatpush1.bf16.msra.mxu0 %v405
    %456 = vmatprep.subr.bf16.mxu0 0
    %457 = vmatpush1.bf16.msra.mxu0 %v406
    %458 = vmatprep.subr.bf16.mxu0 0
    %459 = vmatpush1.bf16.msra.mxu0 %v407
    %460 = vmatprep.subr.bf16.mxu0 0
    %461 = vmatpush1.bf16.msra.mxu0 %v408
    %462 = vmatprep.subr.bf16.mxu0 0
    %463 = vmatpush1.bf16.msra.mxu0 %v409
    %464 = vmatprep.subr.bf16.mxu0 0
    %465 = vmatpush1.bf16.msra.mxu0 %v410
    %466 = vmatprep.subr.bf16.mxu0 0
    %467 = vmatpush1.bf16.msra.mxu0 %v411
    %468 = vmatprep.subr.bf16.mxu0 0
    %469 = vmatpush1.bf16.msra.mxu0 %v412
    %470 = vmatprep.subr.bf16.mxu0 0
    %471 = vmatpush1.bf16.msra.mxu0 %v413
    %472 = vmatprep.subr.bf16.mxu0 0
    %473 = vmatpush1.bf16.msra.mxu0 %v414
    %474 = vmatprep.subr.bf16.mxu0 0
    %475 = vmatpush1.bf16.msra.mxu0 %v415
    %476 = vmatprep.subr.bf16.mxu0 0
    %477 = vmatpush1.bf16.msra.mxu0 %v416
    %478 = vmatprep.subr.bf16.mxu0 0
    %479 = vmatpush1.bf16.msra.mxu0 %v417
    %480 = vmatprep.subr.bf16.mxu0 0
    %481 = vmatpush1.bf16.msra.mxu0 %v418
    %482 = vmatprep.subr.bf16.mxu0 0
    %483 = vmatpush1.bf16.msra.mxu0 %v419
    %484 = vmatprep.mubr.bf16.mxu0 %v306
    %485 = vmatmul.mubr.bf16.gmra.mrb[0].mxu0 %v305
    %v486 = vpop.f32.mrb[0].mxu0
    %v487 = vadd.f32 %v114, %v486
    %v488 = vpop.f32.mrb[0].mxu0
    %v489 = vpop.f32.mrb[0].mxu0
    %v490 = vpop.f32.mrb[0].mxu0
    %491 = vdwg.mxu0
    %492 = vmatprep.subr.bf16.mxu0 0
    %493 = vmatpush1.bf16.msra.mxu0 %v420
    %494 = vmatprep.subr.bf16.mxu0 0
    %495 = vmatpush1.bf16.msra.mxu0 %v421
    %496 = vmatprep.subr.bf16.mxu0 0
    %497 = vmatpush1.bf16.msra.mxu0 %v422
    %498 = vmatprep.subr.bf16.mxu0 0
    %499 = vmatpush1.bf16.msra.mxu0 %v423
    %500 = vmatprep.subr.bf16.mxu0 0
    %501 = vmatpush1.bf16.msra.mxu0 %v424
    %502 = vmatprep.subr.bf16.mxu0 0
    %503 = vmatpush1.bf16.msra.mxu0 %v425
    %504 = vmatprep.subr.bf16.mxu0 0
    %505 = vmatpush1.bf16.msra.mxu0 %v426
    %506 = vmatprep.subr.bf16.mxu0 0
    %507 = vmatpush1.bf16.msra.mxu0 %v427
    %508 = vmatprep.subr.bf16.mxu0 0
    %509 = vmatpush1.bf16.msra.mxu0 0
    %510 = vmatprep.subr.bf16.mxu0 0
    %511 = vmatpush1.bf16.msra.mxu0 0
    %512 = vmatprep.subr.bf16.mxu0 0
    %513 = vmatpush1.bf16.msra.mxu0 0
    %514 = vmatprep.subr.bf16.mxu0 0
    %515 = vmatpush1.bf16.msra.mxu0 0
    %516 = vmatprep.subr.bf16.mxu0 0
    %517 = vmatpush1.bf16.msra.mxu0 0
    %518 = vmatprep.subr.bf16.mxu0 0
    %519 = vmatpush1.bf16.msra.mxu0 0
    %520 = vmatprep.subr.bf16.mxu0 0
    %521 = vmatpush1.bf16.msra.mxu0 0
    %522 = vmatprep.subr.bf16.mxu0 0
    %523 = vmatpush1.bf16.msra.mxu0 0
    %524 = vmatprep.mubr.bf16.mxu0 0
    %525 = vmatmul.mubr.bf16.gmra.mrb[0].mxu0 %v307
    %v526 = vpop.f32.mrb[0].mxu0
    %v527 = vadd.f32 %v487, %v526
    %v528 = vpop.f32.mrb[0].mxu0
    %v529 = vpop.f32.mrb[0].mxu0
    %v530 = vpop.f32.mrb[0].mxu0
    %531 = vdwg.mxu0
    %v532 = vtanh.pop %v527
    %v533 = vmul.f32 %v532, 2.0
    %534 = vst [vmem:[#allocation8] sm:$0xff] %v533
    // Predicated region
    $region26: #{tpu_custom_call.1} parent=1 // pred_check
      _
    $region27: #{tpu_custom_call.1} parent=1 // pred_check_branch
      %536 = sbr.rel (0) target = $region29
    $region28: #{tpu_custom_call.1} parent=1 // pred_region
      %s538 = ssub.s32 128, 128
      %539 = vsyncadd [#allocation4], %s538
      %s541 = sshll.u32 [#allocation8], 4
      %s542 = int_to_ptr.vmem [resolvable:$true] %s541
      %544 = dma.vmem_to_hbm [thread:$0]  %s542, 128, %s3, [#allocation4]
    $region29: #{tpu_custom_call.1} parent=1 // pred_fallthru
      _
    // Predicated region
    $region30: #{tpu_custom_call.1} parent=1 // pred_check
      _
    $region31: #{tpu_custom_call.1} parent=1 // pred_check_branch
      %546 = sbr.rel (0) target = $region33
    $region32: #{tpu_custom_call.1} parent=1 // pred_region
      %547 = dma.done [#allocation4], 128
    $region33: #{tpu_custom_call.1} parent=1 // pred_fallthru
      _
    %548 = vsyncpa [#allocation3], 1
    %549 = vsyncpa [#allocation6], 1
    %550 = vsyncpa [#allocation4], 1

</llo_original>
